<compile_context>
chip_gen: v7x
topology: tpu7x:2x2x1
jax: 0.10.0
libtpu: 0.0.40
codegen_flags: <defaults>
</compile_context>

<pallas_src>
import jax
import jax.numpy as jnp
from jax import lax
from jax.experimental import pallas as pl
from jax.experimental.pallas import tpu as pltpu

INPUT_SIZE = 320
HIDDEN = [128, 64, 32, 16]


def _round_up(n, m):
    return ((n + m - 1) // m) * m


def _pick_block_b(B, cap=1024):
    """Batch-tile rows: multiple of 8, as large as possible (<= cap), and
    capped near B/2 for large batches so the 'parallel' grid axis has >= 2
    steps (v7x has two TensorCores)."""
    if B <= 512:
        return _round_up(max(B, 8), 8)
    half = _round_up((B + 1) // 2, 128)
    return max(128, min(cap, half))


def _mlp_kernel(x_ref,
                w1_ref, b1_ref,
                w2_ref, b2_ref,
                w3_ref, b3_ref,
                w4_ref, b4_ref,
                w5t_ref, b5_ref,
                o_ref):
    # All five layers fused; intermediate activations live in vregs/VMEM.
    h = x_ref[...]  # [block_b, 320] bf16
    for w_ref, b_ref in ((w1_ref, b1_ref), (w2_ref, b2_ref),
                         (w3_ref, b3_ref), (w4_ref, b4_ref)):
        h = jnp.dot(h, w_ref[...], preferred_element_type=jnp.float32)
        h = jnp.maximum(h + b_ref[...], 0.0).astype(jnp.bfloat16)

    # Final 16 -> 1 layer, produced lane-dense as a [1, block_b] row:
    #   out[0, b] = sum_k w5t[0, k] * h[b, k] + b5
    out = lax.dot_general(w5t_ref[...], h,
                          dimension_numbers=(((1,), (1,)), ((), ())),
                          preferred_element_type=jnp.float32)
    out = out + b5_ref[...]              # [1, block_b] + [1, 1]
    o_ref[...] = out.astype(o_ref.dtype)


def esm_imputer_forward(x, params, *, block_b=None):
    """x: [B, INPUT_SIZE] float32. params: list of (W, b) with W [in, out], b [1, out]."""
    B, D = x.shape
    assert D == INPUT_SIZE

    if block_b is None:
        block_b = _pick_block_b(B)
    block_b = max(8, _round_up(block_b, 8))

    B_pad = _round_up(B, block_b)
    num_blocks = B_pad // block_b

    # bf16 HBM stream for x (and weights); pad batch to a tile multiple.
    x_bf = x.astype(jnp.bfloat16)
    if B_pad != B:
        x_bf = jnp.pad(x_bf, ((0, B_pad - B), (0, 0)))

    (w1, b1), (w2, b2), (w3, b3), (w4, b4), (w5, b5) = params
    w1, w2, w3, w4 = (w.astype(jnp.bfloat16) for w in (w1, w2, w3, w4))
    w5t = w5.T.astype(jnp.bfloat16)          # [1, 16]
    b1, b2, b3, b4 = (b.astype(jnp.float32) for b in (b1, b2, b3, b4))
    b5 = b5.astype(jnp.float32)              # [1, 1]

    def x_map(i):
        return (i, 0)

    def rep_map(i):
        return (0, 0)

    ws_bs = [(w1, b1), (w2, b2), (w3, b3), (w4, b4), (w5t, b5)]

    # Only the batch axis of x / out is tiled; weights and biases use their
    # full array shapes as block shapes (constant index_map -> fetched once).
    in_specs = [pl.BlockSpec((block_b, D), x_map)]
    for w, b in ws_bs:
        in_specs.append(pl.BlockSpec(w.shape, rep_map))
        in_specs.append(pl.BlockSpec(b.shape, rep_map))

    out_spec = pl.BlockSpec((1, block_b), x_map)   # lane-dense output rows

    flat_wb = [a for wb in ws_bs for a in wb]

    out = pl.pallas_call(
        _mlp_kernel,
        out_shape=jax.ShapeDtypeStruct((num_blocks, block_b), jnp.float32),
        grid_spec=pltpu.PrefetchScalarGridSpec(
            num_scalar_prefetch=0,
            grid=(num_blocks,),
            in_specs=in_specs,
            out_specs=out_spec,
        ),
        compiler_params=pltpu.CompilerParams(
            dimension_semantics=("parallel",)),
    )(x_bf, *flat_wb)

    # [num_blocks, block_b] -> [B_pad, 1] -> drop padded rows.
    return out.reshape(B_pad, 1)[:B]


def init_params(key):
    """Deterministic init matching PyTorch nn.Linear default (U[-1/sqrt(fan_in), +])."""
    sizes = [INPUT_SIZE] + HIDDEN + [1]
    params = []
    for i in range(len(sizes) - 1):
        fan_in, fan_out = sizes[i], sizes[i + 1]
        key, kw, kb = jax.random.split(key, 3)
        bound = 1.0 / jnp.sqrt(fan_in)
        w = jax.random.uniform(kw, (fan_in, fan_out), jnp.float32, -bound, bound)
        b = jax.random.uniform(kb, (1, fan_out), jnp.float32, -bound, bound)
        params.append((w, b))
    return params


def reference_forward(x, params):
    h = x
    for i, (w, b) in enumerate(params):
        h = h @ w + b
        if i < len(params) - 1:
            h = jnp.maximum(h, 0.0)
    return h


if __name__ == "__main__":
    key = jax.random.PRNGKey(0)
    kx, kp = jax.random.split(key)

    B = 13  # deliberately not a multiple of 8 to exercise the padding path
    x = jax.random.normal(kx, (B, INPUT_SIZE), jnp.float32)
    params = init_params(kp)

    out = jax.block_until_ready(esm_imputer_forward(x, params))

    ref = reference_forward(x, params)
    assert out.shape == (B, 1), out.shape
    # bf16 inputs/weights with f32 accumulation -> compare to the f32 reference
    # with a correspondingly relaxed tolerance.
    assert jnp.allclose(out, ref, atol=5e-2, rtol=5e-2), (out, ref)

    print("KERNEL_OK")
</pallas_src>

<mosaic_0001>
module attributes {stable_mosaic.version = 11 : i64} {
  func.func @_mlp_kernel(%arg0: i32, %arg1: memref<16x320xbf16, #tpu.memory_space<vmem>>, %arg2: memref<320x128xbf16, #tpu.memory_space<vmem>>, %arg3: memref<1x128xf32, #tpu.memory_space<vmem>>, %arg4: memref<128x64xbf16, #tpu.memory_space<vmem>>, %arg5: memref<1x64xf32, #tpu.memory_space<vmem>>, %arg6: memref<64x32xbf16, #tpu.memory_space<vmem>>, %arg7: memref<1x32xf32, #tpu.memory_space<vmem>>, %arg8: memref<32x16xbf16, #tpu.memory_space<vmem>>, %arg9: memref<1x16xf32, #tpu.memory_space<vmem>>, %arg10: memref<1x16xbf16, #tpu.memory_space<vmem>>, %arg11: memref<1x1xf32, #tpu.memory_space<vmem>>, %arg12: memref<1x16xf32, #tpu.memory_space<vmem>>) attributes {dimension_semantics = [#tpu.dimension_semantics<parallel>], iteration_bounds = array<i64: 1>, scalar_prefetch = 0 : i64, scratch_operands = 0 : i64, tpu.core_type = #tpu.core_type<tc>, window_params = [{transform_indices = @transform_0, window_bounds = array<i64: 16, 320>}, {pipeline_mode = #tpu.pipeline_mode<synchronous>, transform_indices = @transform_1, window_bounds = array<i64: 320, 128>}, {pipeline_mode = #tpu.pipeline_mode<synchronous>, transform_indices = @transform_2, window_bounds = array<i64: 1, 128>}, {pipeline_mode = #tpu.pipeline_mode<synchronous>, transform_indices = @transform_3, window_bounds = array<i64: 128, 64>}, {pipeline_mode = #tpu.pipeline_mode<synchronous>, transform_indices = @transform_4, window_bounds = array<i64: 1, 64>}, {pipeline_mode = #tpu.pipeline_mode<synchronous>, transform_indices = @transform_5, window_bounds = array<i64: 64, 32>}, {pipeline_mode = #tpu.pipeline_mode<synchronous>, transform_indices = @transform_6, window_bounds = array<i64: 1, 32>}, {pipeline_mode = #tpu.pipeline_mode<synchronous>, transform_indices = @transform_7, window_bounds = array<i64: 32, 16>}, {pipeline_mode = #tpu.pipeline_mode<synchronous>, transform_indices = @transform_8, window_bounds = array<i64: 1, 16>}, {pipeline_mode = #tpu.pipeline_mode<synchronous>, transform_indices = @transform_9, window_bounds = array<i64: 1, 16>}, {pipeline_mode = #tpu.pipeline_mode<synchronous>, transform_indices = @transform_10, window_bounds = array<i64: 1, 1>}, {transform_indices = @transform_11, window_bounds = array<i64: 1, 16>}]} {
    %c0 = arith.constant 0 : index
    %c0_0 = arith.constant 0 : index
    %0 = vector.load %arg1[%c0, %c0_0] : memref<16x320xbf16, #tpu.memory_space<vmem>>, vector<16x320xbf16>
    %c0_1 = arith.constant 0 : index
    %c0_2 = arith.constant 0 : index
    %1 = vector.load %arg2[%c0_1, %c0_2] : memref<320x128xbf16, #tpu.memory_space<vmem>>, vector<320x128xbf16>
    %cst = arith.constant dense<0.000000e+00> : vector<16x128xf32>
    %2 = tpu.matmul %0, %1, %cst {dimension_numbers = #tpu.dot_dimension_numbers<[1], [0], [0], [1], [0, 0, 1, 1], [], []>} : vector<16x320xbf16>, vector<320x128xbf16>, vector<16x128xf32> -> vector<16x128xf32>
    %c0_3 = arith.constant 0 : index
    %c0_4 = arith.constant 0 : index
    %3 = vector.load %arg3[%c0_3, %c0_4] : memref<1x128xf32, #tpu.memory_space<vmem>>, vector<1x128xf32>
    %4 = vector.broadcast %3 : vector<1x128xf32> to vector<16x128xf32>
    %5 = arith.addf %2, %4 : vector<16x128xf32>
    %cst_5 = arith.constant 0.000000e+00 : f32
    %6 = vector.broadcast %cst_5 : f32 to vector<16x128xf32>
    %7 = arith.maximumf %5, %6 : vector<16x128xf32>
    %8 = arith.truncf %7 : vector<16x128xf32> to vector<16x128xbf16>
    %c0_6 = arith.constant 0 : index
    %c0_7 = arith.constant 0 : index
    %9 = vector.load %arg4[%c0_6, %c0_7] : memref<128x64xbf16, #tpu.memory_space<vmem>>, vector<128x64xbf16>
    %cst_8 = arith.constant dense<0.000000e+00> : vector<16x64xf32>
    %10 = tpu.matmul %8, %9, %cst_8 {dimension_numbers = #tpu.dot_dimension_numbers<[1], [0], [0], [1], [0, 0, 1, 1], [], []>} : vector<16x128xbf16>, vector<128x64xbf16>, vector<16x64xf32> -> vector<16x64xf32>
    %c0_9 = arith.constant 0 : index
    %c0_10 = arith.constant 0 : index
    %11 = vector.load %arg5[%c0_9, %c0_10] : memref<1x64xf32, #tpu.memory_space<vmem>>, vector<1x64xf32>
    %12 = vector.broadcast %11 : vector<1x64xf32> to vector<16x64xf32>
    %13 = arith.addf %10, %12 : vector<16x64xf32>
    %cst_11 = arith.constant 0.000000e+00 : f32
    %14 = vector.broadcast %cst_11 : f32 to vector<16x64xf32>
    %15 = arith.maximumf %13, %14 : vector<16x64xf32>
    %16 = arith.truncf %15 : vector<16x64xf32> to vector<16x64xbf16>
    %c0_12 = arith.constant 0 : index
    %c0_13 = arith.constant 0 : index
    %17 = vector.load %arg6[%c0_12, %c0_13] : memref<64x32xbf16, #tpu.memory_space<vmem>>, vector<64x32xbf16>
    %cst_14 = arith.constant dense<0.000000e+00> : vector<16x32xf32>
    %18 = tpu.matmul %16, %17, %cst_14 {dimension_numbers = #tpu.dot_dimension_numbers<[1], [0], [0], [1], [0, 0, 1, 1], [], []>} : vector<16x64xbf16>, vector<64x32xbf16>, vector<16x32xf32> -> vector<16x32xf32>
    %c0_15 = arith.constant 0 : index
    %c0_16 = arith.constant 0 : index
    %19 = vector.load %arg7[%c0_15, %c0_16] : memref<1x32xf32, #tpu.memory_space<vmem>>, vector<1x32xf32>
    %20 = vector.broadcast %19 : vector<1x32xf32> to vector<16x32xf32>
    %21 = arith.addf %18, %20 : vector<16x32xf32>
    %cst_17 = arith.constant 0.000000e+00 : f32
    %22 = vector.broadcast %cst_17 : f32 to vector<16x32xf32>
    %23 = arith.maximumf %21, %22 : vector<16x32xf32>
    %24 = arith.truncf %23 : vector<16x32xf32> to vector<16x32xbf16>
    %c0_18 = arith.constant 0 : index
    %c0_19 = arith.constant 0 : index
    %25 = vector.load %arg8[%c0_18, %c0_19] : memref<32x16xbf16, #tpu.memory_space<vmem>>, vector<32x16xbf16>
    %cst_20 = arith.constant dense<0.000000e+00> : vector<16x16xf32>
    %26 = tpu.matmul %24, %25, %cst_20 {dimension_numbers = #tpu.dot_dimension_numbers<[1], [0], [0], [1], [0, 0, 1, 1], [], []>} : vector<16x32xbf16>, vector<32x16xbf16>, vector<16x16xf32> -> vector<16x16xf32>
    %c0_21 = arith.constant 0 : index
    %c0_22 = arith.constant 0 : index
    %27 = vector.load %arg9[%c0_21, %c0_22] : memref<1x16xf32, #tpu.memory_space<vmem>>, vector<1x16xf32>
    %28 = vector.broadcast %27 : vector<1x16xf32> to vector<16x16xf32>
    %29 = arith.addf %26, %28 : vector<16x16xf32>
    %cst_23 = arith.constant 0.000000e+00 : f32
    %30 = vector.broadcast %cst_23 : f32 to vector<16x16xf32>
    %31 = arith.maximumf %29, %30 : vector<16x16xf32>
    %32 = arith.truncf %31 : vector<16x16xf32> to vector<16x16xbf16>
    %c0_24 = arith.constant 0 : index
    %c0_25 = arith.constant 0 : index
    %33 = vector.load %arg10[%c0_24, %c0_25] : memref<1x16xbf16, #tpu.memory_space<vmem>>, vector<1x16xbf16>
    %cst_26 = arith.constant dense<0.000000e+00> : vector<1x16xf32>
    %34 = tpu.matmul %33, %32, %cst_26 {dimension_numbers = #tpu.dot_dimension_numbers<[1], [1], [0], [0], [0, 0, 1, 0], [], []>} : vector<1x16xbf16>, vector<16x16xbf16>, vector<1x16xf32> -> vector<1x16xf32>
    %c0_27 = arith.constant 0 : index
    %c0_28 = arith.constant 0 : index
    %35 = vector.load %arg11[%c0_27, %c0_28] : memref<1x1xf32, #tpu.memory_space<vmem>>, vector<1x1xf32>
    %36 = vector.broadcast %35 : vector<1x1xf32> to vector<1x16xf32>
    %37 = arith.addf %34, %36 : vector<1x16xf32>
    %c0_29 = arith.constant 0 : index
    %c0_30 = arith.constant 0 : index
    %38 = vector.load %arg12[%c0_29, %c0_30] : memref<1x16xf32, #tpu.memory_space<vmem>>, vector<1x16xf32>
    tpu.vector_store %arg12[%c0_29, %c0_30], %37 {strides = array<i32>} : memref<1x16xf32, #tpu.memory_space<vmem>>, vector<1x16xf32>,
    return
  }
  func.func @transform_0(%arg0: i32) -> (i32, i32) {
    %c0_i32 = arith.constant 0 : i32
    %c0_i32_0 = arith.constant 0 : i32
    return %arg0, %c0_i32 : i32, i32
  }
  func.func @transform_1(%arg0: i32) -> (i32, i32) {
    %c0_i32 = arith.constant 0 : i32
    %c0_i32_0 = arith.constant 0 : i32
    %c0_i32_1 = arith.constant 0 : i32
    return %c0_i32, %c0_i32_0 : i32, i32
  }
  func.func @transform_2(%arg0: i32) -> (i32, i32) {
    %c0_i32 = arith.constant 0 : i32
    %c0_i32_0 = arith.constant 0 : i32
    %c0_i32_1 = arith.constant 0 : i32
    return %c0_i32, %c0_i32_0 : i32, i32
  }
  func.func @transform_3(%arg0: i32) -> (i32, i32) {
    %c0_i32 = arith.constant 0 : i32
    %c0_i32_0 = arith.constant 0 : i32
    %c0_i32_1 = arith.constant 0 : i32
    return %c0_i32, %c0_i32_0 : i32, i32
  }
  func.func @transform_4(%arg0: i32) -> (i32, i32) {
    %c0_i32 = arith.constant 0 : i32
    %c0_i32_0 = arith.constant 0 : i32
    %c0_i32_1 = arith.constant 0 : i32
    return %c0_i32, %c0_i32_0 : i32, i32
  }
  func.func @transform_5(%arg0: i32) -> (i32, i32) {
    %c0_i32 = arith.constant 0 : i32
    %c0_i32_0 = arith.constant 0 : i32
    %c0_i32_1 = arith.constant 0 : i32
    return %c0_i32, %c0_i32_0 : i32, i32
  }
  func.func @transform_6(%arg0: i32) -> (i32, i32) {
    %c0_i32 = arith.constant 0 : i32
    %c0_i32_0 = arith.constant 0 : i32
    %c0_i32_1 = arith.constant 0 : i32
    return %c0_i32, %c0_i32_0 : i32, i32
  }
  func.func @transform_7(%arg0: i32) -> (i32, i32) {
    %c0_i32 = arith.constant 0 : i32
    %c0_i32_0 = arith.constant 0 : i32
    %c0_i32_1 = arith.constant 0 : i32
    return %c0_i32, %c0_i32_0 : i32, i32
  }
  func.func @transform_8(%arg0: i32) -> (i32, i32) {
    %c0_i32 = arith.constant 0 : i32
    %c0_i32_0 = arith.constant 0 : i32
    %c0_i32_1 = arith.constant 0 : i32
    return %c0_i32, %c0_i32_0 : i32, i32
  }
  func.func @transform_9(%arg0: i32) -> (i32, i32) {
    %c0_i32 = arith.constant 0 : i32
    %c0_i32_0 = arith.constant 0 : i32
    %c0_i32_1 = arith.constant 0 : i32
    return %c0_i32, %c0_i32_0 : i32, i32
  }
  func.func @transform_10(%arg0: i32) -> (i32, i32) {
    %c0_i32 = arith.constant 0 : i32
    %c0_i32_0 = arith.constant 0 : i32
    %c0_i32_1 = arith.constant 0 : i32
    return %c0_i32, %c0_i32_0 : i32, i32
  }
  func.func @transform_11(%arg0: i32) -> (i32, i32) {
    %c0_i32 = arith.constant 0 : i32
    %c0_i32_0 = arith.constant 0 : i32
    return %arg0, %c0_i32 : i32, i32
  }
}

</mosaic_0001>

<llo_original>
// kernel: tpu_custom_call.1
$region0: #{tpu_custom_call.1}
  #allocation0 [shape = 'u32[]', space=smem, size = 0x4, offset = 0x4, fixed_abs, tag = 'smem constant byte address 0x4 - core index']
  #allocation1 [shape = 'u32[144,128]{1,0:T(1,128)}', space=vmem, size = 0x12000, scoped, tag = 'internal scratch']
  #allocation2 [shape = 'f32[1,1]{1,0:T(1,128)S(1)}', space=vmem, size = 0x200, scoped, tag = 'scoped memory for tpu_custom_call.1']
  %s0 = inlined_call_operand.hbm [shape: bf16[16,320], index: 0, kind: input, shape index: {}]
  %s1 = inlined_call_operand.vmem [shape: bf16[320,128], index: 1, kind: input, shape index: {}]
  %s2 = inlined_call_operand.vmem [shape: f32[1,128], index: 2, kind: input, shape index: {}]
  %s3 = inlined_call_operand.vmem [shape: bf16[128,64], index: 3, kind: input, shape index: {}]
  %s4 = inlined_call_operand.vmem [shape: f32[1,64], index: 4, kind: input, shape index: {}]
  %s5 = inlined_call_operand.vmem [shape: bf16[64,32], index: 5, kind: input, shape index: {}]
  %s6 = inlined_call_operand.vmem [shape: f32[1,32], index: 6, kind: input, shape index: {}]
  %s7 = inlined_call_operand.vmem [shape: bf16[32,16], index: 7, kind: input, shape index: {}]
  %s8 = inlined_call_operand.vmem [shape: f32[1,16], index: 8, kind: input, shape index: {}]
  %s9 = inlined_call_operand.vmem [shape: bf16[1,16], index: 9, kind: input, shape index: {}]
  %s10 = inlined_call_operand.<no memory space> [shape: f32[1,1], index: 10, kind: input, shape index: {}]
  %s11 = inlined_call_operand.hbm [shape: f32[1,16], index: 11, kind: output, shape index: {}]
  %s12 = sld [smem:[#allocation0]]
  $region58: #{tpu_custom_call.1} parent=0
    _
  %s14 = ssub.s32 1, %s12
  %s15 = scalar_select 0, %s14, %s12
  %v16 = vstv %s10
  %17 = vst [vmem:[#allocation2] sm:$0x1] %v16
  $region1: #{tpu_custom_call.1} parent=0
    #allocation3 [shape = 'u8[12288]{0}', space=vmem, size = 0x3000, scoped, tag = 'input window, operand 0, single buffered']
    #allocation4 [shape = 's32[1]{0}', space=sflag, size = 0x4, scoped, tag = 'scoped memory for tpu_custom_call.1']
    #allocation5 [shape = 's32[1]{0}', space=sflag, size = 0x4, scoped, tag = 'scoped memory for tpu_custom_call.1']
    #allocation6 [shape = 'u8[512]{0}', space=vmem, size = 0x400, scoped, tag = 'output window, operand 0, single buffered']
    %18 = vsyncpa [#allocation4], 0
    %19 = vsyncpa [#allocation5], 0
    // Predicated region
    $region2: #{tpu_custom_call.1} parent=1 // pred_check
      _
    $region3: #{tpu_custom_call.1} parent=1 // pred_check_branch
      %21 = sbr.rel (0) target = $region5
    $region4: #{tpu_custom_call.1} parent=1 // pred_region
      %s23 = ssub.s32 384, 384
      %24 = vsyncadd [#allocation4], %s23
      %s25 = sshll.u32 [#allocation3], 4
      %s26 = int_to_ptr.vmem [resolvable:$true] %s25
      %31 = dma.hbm_to_vmem [thread:$0]  %s0, 384, %s26, [#allocation4], 192, 192, 12
    $region5: #{tpu_custom_call.1} parent=1 // pred_fallthru
      _
    // Predicated region
    $region6: #{tpu_custom_call.1} parent=1 // pred_check
      _
    $region7: #{tpu_custom_call.1} parent=1 // pred_check_branch
      %33 = sbr.rel (0) target = $region9
    $region8: #{tpu_custom_call.1} parent=1 // pred_region
      _
    $region9: #{tpu_custom_call.1} parent=1 // pred_fallthru
      _
    // Predicated region
    $region10: #{tpu_custom_call.1} parent=1 // pred_check
      _
    $region11: #{tpu_custom_call.1} parent=1 // pred_check_branch
      %35 = sbr.rel (0) target = $region13
    $region12: #{tpu_custom_call.1} parent=1 // pred_region
      _
    $region13: #{tpu_custom_call.1} parent=1 // pred_fallthru
      _
    // Predicated region
    $region14: #{tpu_custom_call.1} parent=1 // pred_check
      _
    $region15: #{tpu_custom_call.1} parent=1 // pred_check_branch
      %37 = sbr.rel (0) target = $region17
    $region16: #{tpu_custom_call.1} parent=1 // pred_region
      _
    $region17: #{tpu_custom_call.1} parent=1 // pred_fallthru
      _
    // Predicated region
    $region18: #{tpu_custom_call.1} parent=1 // pred_check
      _
    $region19: #{tpu_custom_call.1} parent=1 // pred_check_branch
      %39 = sbr.rel (0) target = $region21
    $region20: #{tpu_custom_call.1} parent=1 // pred_region
      _
    $region21: #{tpu_custom_call.1} parent=1 // pred_fallthru
      _
    // Predicated region
    $region22: #{tpu_custom_call.1} parent=1 // pred_check
      _
    $region23: #{tpu_custom_call.1} parent=1 // pred_check_branch
      %41 = sbr.rel (0) target = $region25
    $region24: #{tpu_custom_call.1} parent=1 // pred_region
      _
    $region25: #{tpu_custom_call.1} parent=1 // pred_fallthru
      _
    // Predicated region
    $region26: #{tpu_custom_call.1} parent=1 // pred_check
      _
    $region27: #{tpu_custom_call.1} parent=1 // pred_check_branch
      %43 = sbr.rel (0) target = $region29
    $region28: #{tpu_custom_call.1} parent=1 // pred_region
      _
    $region29: #{tpu_custom_call.1} parent=1 // pred_fallthru
      _
    // Predicated region
    $region30: #{tpu_custom_call.1} parent=1 // pred_check
      _
    $region31: #{tpu_custom_call.1} parent=1 // pred_check_branch
      %45 = sbr.rel (0) target = $region33
    $region32: #{tpu_custom_call.1} parent=1 // pred_region
      _
    $region33: #{tpu_custom_call.1} parent=1 // pred_fallthru
      _
    // Predicated region
    $region34: #{tpu_custom_call.1} parent=1 // pred_check
      _
    $region35: #{tpu_custom_call.1} parent=1 // pred_check_branch
      %47 = sbr.rel (0) target = $region37
    $region36: #{tpu_custom_call.1} parent=1 // pred_region
      _
    $region37: #{tpu_custom_call.1} parent=1 // pred_fallthru
      _
    // Predicated region
    $region38: #{tpu_custom_call.1} parent=1 // pred_check
      _
    $region39: #{tpu_custom_call.1} parent=1 // pred_check_branch
      %49 = sbr.rel (0) target = $region41
    $region40: #{tpu_custom_call.1} parent=1 // pred_region
      _
    $region41: #{tpu_custom_call.1} parent=1 // pred_fallthru
      _
    // Predicated region
    $region42: #{tpu_custom_call.1} parent=1 // pred_check
      _
    $region43: #{tpu_custom_call.1} parent=1 // pred_check_branch
      %51 = sbr.rel (0) target = $region45
    $region44: #{tpu_custom_call.1} parent=1 // pred_region
      _
    $region45: #{tpu_custom_call.1} parent=1 // pred_fallthru
      _
    // Predicated region
    $region46: #{tpu_custom_call.1} parent=1 // pred_check
      _
    $region47: #{tpu_custom_call.1} parent=1 // pred_check_branch
      %53 = sbr.rel (0) target = $region49
    $region48: #{tpu_custom_call.1} parent=1 // pred_region
      %54 = dma.done [#allocation4], 384
    $region49: #{tpu_custom_call.1} parent=1 // pred_fallthru
      _
    %v56 = vld [vmem:[#allocation3] sm:$0xff]
    %v57 = vld [vmem:[#allocation3 + $0x8] sm:$0xf]
    %v58 = vld [vmem:[#allocation3 + $0xc] sm:$0xff]
    %v59 = vld [vmem:[#allocation3 + $0x14] sm:$0xf]
    %v60 = vld [vmem:[%s1] sm:$0xf]
    %v61 = vld [vmem:[%s1 + $0x4] sm:$0xf]
    %v62 = vld [vmem:[%s1 + $0x8] sm:$0xf]
    %v63 = vld [vmem:[%s1 + $0xc] sm:$0xf]
    %v64 = vld [vmem:[%s1 + $0x10] sm:$0xf]
    %v65 = vld [vmem:[%s1 + $0x14] sm:$0xf]
    %v66 = vld [vmem:[%s1 + $0x18] sm:$0xf]
    %v67 = vld [vmem:[%s1 + $0x1c] sm:$0xf]
    %v68 = vld [vmem:[%s1 + $0x20] sm:$0xf]
    %v69 = vld [vmem:[%s1 + $0x24] sm:$0xf]
    %v70 = vld [vmem:[%s1 + $0x28] sm:$0xf]
    %v71 = vld [vmem:[%s1 + $0x2c] sm:$0xf]
    %v72 = vld [vmem:[%s1 + $0x30] sm:$0xf]
    %v73 = vld [vmem:[%s1 + $0x34] sm:$0xf]
    %v74 = vld [vmem:[%s1 + $0x38] sm:$0xf]
    %v75 = vld [vmem:[%s1 + $0x3c] sm:$0xf]
    %v76 = vld [vmem:[%s1 + $0x40] sm:$0xf]
    %v77 = vld [vmem:[%s1 + $0x44] sm:$0xf]
    %v78 = vld [vmem:[%s1 + $0x48] sm:$0xf]
    %v79 = vld [vmem:[%s1 + $0x4c] sm:$0xf]
    %v80 = vld [vmem:[%s1 + $0x50] sm:$0xf]
    %v81 = vld [vmem:[%s1 + $0x54] sm:$0xf]
    %v82 = vld [vmem:[%s1 + $0x58] sm:$0xf]
    %v83 = vld [vmem:[%s1 + $0x5c] sm:$0xf]
    %v84 = vld [vmem:[%s1 + $0x60] sm:$0xf]
    %v85 = vld [vmem:[%s1 + $0x64] sm:$0xf]
    %v86 = vld [vmem:[%s1 + $0x68] sm:$0xf]
    %v87 = vld [vmem:[%s1 + $0x6c] sm:$0xf]
    %v88 = vld [vmem:[%s1 + $0x70] sm:$0xf]
    %v89 = vld [vmem:[%s1 + $0x74] sm:$0xf]
    %v90 = vld [vmem:[%s1 + $0x78] sm:$0xf]
    %v91 = vld [vmem:[%s1 + $0x7c] sm:$0xf]
    %v92 = vld [vmem:[%s1 + $0x80] sm:$0xf]
    %v93 = vld [vmem:[%s1 + $0x84] sm:$0xf]
    %v94 = vld [vmem:[%s1 + $0x88] sm:$0xf]
    %v95 = vld [vmem:[%s1 + $0x8c] sm:$0xf]
    %v96 = vld [vmem:[%s1 + $0x90] sm:$0xf]
    %v97 = vld [vmem:[%s1 + $0x94] sm:$0xf]
    %v98 = vld [vmem:[%s1 + $0x98] sm:$0xf]
    %v99 = vld [vmem:[%s1 + $0x9c] sm:$0xf]
    %v100 = vld [vmem:[%s2] sm:$0x1]
    %v102 = vlaneseq
    %v103 = vshrl.u32 %v102, 7
    %v104 = vsub.s32 0, %v103
    %v105 = vrot.slane %v100, %v104
    %v111 = vunpack.c.l.b16 %v56
    %v112 = vunpack.c.h.b16 %v56
    %v113 = vunpack.c.l.b16 %v57
    %v114 = vunpack.c.l.b16 %v58
    %v115 = vunpack.c.h.b16 %v58
    %v116 = vunpack.c.l.b16 %v59
    %v117 = vpack.c.b16 %v114, %v111
    %v118 = vpack.c.b16 %v115, %v112
    %v119 = vpack.c.b16 %v116, %v113
    %v162 = vunpack.c.l.b16 %v60
    %v163 = vunpack.c.l.b16 %v61
    %v164 = vunpack.c.l.b16 %v62
    %v165 = vunpack.c.l.b16 %v63
    %v166 = vunpack.c.l.b16 %v64
    %v167 = vunpack.c.l.b16 %v65
    %v168 = vunpack.c.l.b16 %v66
    %v169 = vunpack.c.l.b16 %v67
    %v170 = vunpack.c.l.b16 %v68
    %v171 = vunpack.c.l.b16 %v69
    %v172 = vunpack.c.l.b16 %v70
    %v173 = vunpack.c.l.b16 %v71
    %v174 = vunpack.c.l.b16 %v72
    %v175 = vunpack.c.l.b16 %v73
    %v176 = vunpack.c.l.b16 %v74
    %v177 = vunpack.c.l.b16 %v75
    %v178 = vunpack.c.l.b16 %v76
    %v179 = vunpack.c.l.b16 %v77
    %v180 = vunpack.c.l.b16 %v78
    %v181 = vunpack.c.l.b16 %v79
    %v182 = vunpack.c.l.b16 %v80
    %v183 = vunpack.c.l.b16 %v81
    %v184 = vunpack.c.l.b16 %v82
    %v185 = vunpack.c.l.b16 %v83
    %v186 = vunpack.c.l.b16 %v84
    %v187 = vunpack.c.l.b16 %v85
    %v188 = vunpack.c.l.b16 %v86
    %v189 = vunpack.c.l.b16 %v87
    %v190 = vunpack.c.l.b16 %v88
    %v191 = vunpack.c.l.b16 %v89
    %v192 = vunpack.c.l.b16 %v90
    %v193 = vunpack.c.l.b16 %v91
    %v194 = vunpack.c.l.b16 %v92
    %v195 = vunpack.c.l.b16 %v93
    %v196 = vunpack.c.l.b16 %v94
    %v197 = vunpack.c.l.b16 %v95
    %v198 = vunpack.c.l.b16 %v96
    %v199 = vunpack.c.l.b16 %v97
    %v200 = vunpack.c.l.b16 %v98
    %v201 = vunpack.c.l.b16 %v99
    %v202 = vpack.c.b16 %v163, %v162
    %v203 = vpack.c.b16 %v165, %v164
    %v204 = vpack.c.b16 %v167, %v166
    %v205 = vpack.c.b16 %v169, %v168
    %v206 = vpack.c.b16 %v171, %v170
    %v207 = vpack.c.b16 %v173, %v172
    %v208 = vpack.c.b16 %v175, %v174
    %v209 = vpack.c.b16 %v177, %v176
    %v210 = vpack.c.b16 %v179, %v178
    %v211 = vpack.c.b16 %v181, %v180
    %v212 = vpack.c.b16 %v183, %v182
    %v213 = vpack.c.b16 %v185, %v184
    %v214 = vpack.c.b16 %v187, %v186
    %v215 = vpack.c.b16 %v189, %v188
    %v216 = vpack.c.b16 %v191, %v190
    %v217 = vpack.c.b16 %v193, %v192
    %v218 = vpack.c.b16 %v195, %v194
    %v219 = vpack.c.b16 %v197, %v196
    %v220 = vpack.c.b16 %v199, %v198
    %v221 = vpack.c.b16 %v201, %v200
    %vm242 = vcmask 523264
    %v244 = vsel %vm242, %v119, 0
    %246 = vmatprep.subr.bf16.mxu0 0
    %247 = vmatpush1.bf16.msra.mxu0 %v202
    %248 = vmatprep.subr.bf16.mxu0 0
    %249 = vmatpush1.bf16.msra.mxu0 %v203
    %250 = vmatprep.subr.bf16.mxu0 0
    %251 = vmatpush1.bf16.msra.mxu0 %v204
    %252 = vmatprep.subr.bf16.mxu0 0
    %253 = vmatpush1.bf16.msra.mxu0 %v205
    %254 = vmatprep.subr.bf16.mxu0 0
    %255 = vmatpush1.bf16.msra.mxu0 %v206
    %256 = vmatprep.subr.bf16.mxu0 0
    %257 = vmatpush1.bf16.msra.mxu0 %v207
    %258 = vmatprep.subr.bf16.mxu0 0
    %259 = vmatpush1.bf16.msra.mxu0 %v208
    %260 = vmatprep.subr.bf16.mxu0 0
    %261 = vmatpush1.bf16.msra.mxu0 %v209
    %262 = vmatprep.subr.bf16.mxu0 0
    %263 = vmatpush1.bf16.msra.mxu0 %v210
    %264 = vmatprep.subr.bf16.mxu0 0
    %265 = vmatpush1.bf16.msra.mxu0 %v211
    %266 = vmatprep.subr.bf16.mxu0 0
    %267 = vmatpush1.bf16.msra.mxu0 %v212
    %268 = vmatprep.subr.bf16.mxu0 0
    %269 = vmatpush1.bf16.msra.mxu0 %v213
    %270 = vmatprep.subr.bf16.mxu0 0
    %271 = vmatpush1.bf16.msra.mxu0 %v214
    %272 = vmatprep.subr.bf16.mxu0 0
    %273 = vmatpush1.bf16.msra.mxu0 %v215
    %274 = vmatprep.subr.bf16.mxu0 0
    %275 = vmatpush1.bf16.msra.mxu0 %v216
    %276 = vmatprep.subr.bf16.mxu0 0
    %277 = vmatpush1.bf16.msra.mxu0 %v217
    %278 = vmatprep.mubr.bf16.mxu0 %v118
    %279 = vmatmul.mubr.bf16.gmra.mrb[0].mxu0 %v117
    %v280 = vpop.f32.mrb[0].mxu0
    %v281 = vadd.f32 %v105, %v280
    %v282 = vpop.f32.mrb[0].mxu0
    %v283 = vpop.f32.mrb[0].mxu0
    %v284 = vadd.f32 %v105, %v283
    %v285 = vpop.f32.mrb[0].mxu0
    %286 = vdwg.mxu0
    %287 = vmatprep.subr.bf16.mxu0 0
    %288 = vmatpush1.bf16.msra.mxu0 %v218
    %289 = vmatprep.subr.bf16.mxu0 0
    %290 = vmatpush1.bf16.msra.mxu0 %v219
    %291 = vmatprep.subr.bf16.mxu0 0
    %292 = vmatpush1.bf16.msra.mxu0 %v220
    %293 = vmatprep.subr.bf16.mxu0 0
    %294 = vmatpush1.bf16.msra.mxu0 %v221
    %295 = vmatprep.subr.bf16.mxu0 0
    %296 = vmatpush1.bf16.msra.mxu0 0
    %297 = vmatprep.subr.bf16.mxu0 0
    %298 = vmatpush1.bf16.msra.mxu0 0
    %299 = vmatprep.subr.bf16.mxu0 0
    %300 = vmatpush1.bf16.msra.mxu0 0
    %301 = vmatprep.subr.bf16.mxu0 0
    %302 = vmatpush1.bf16.msra.mxu0 0
    %303 = vmatprep.subr.bf16.mxu0 0
    %304 = vmatpush1.bf16.msra.mxu0 0
    %305 = vmatprep.subr.bf16.mxu0 0
    %306 = vmatpush1.bf16.msra.mxu0 0
    %307 = vmatprep.subr.bf16.mxu0 0
    %308 = vmatpush1.bf16.msra.mxu0 0
    %309 = vmatprep.subr.bf16.mxu0 0
    %310 = vmatpush1.bf16.msra.mxu0 0
    %311 = vmatprep.subr.bf16.mxu0 0
    %312 = vmatpush1.bf16.msra.mxu0 0
    %313 = vmatprep.subr.bf16.mxu0 0
    %314 = vmatpush1.bf16.msra.mxu0 0
    %315 = vmatprep.subr.bf16.mxu0 0
    %316 = vmatpush1.bf16.msra.mxu0 0
    %317 = vmatprep.subr.bf16.mxu0 0
    %318 = vmatpush1.bf16.msra.mxu0 0
    %319 = vmatprep.mubr.bf16.mxu0 0
    %320 = vmatmul.mubr.bf16.gmra.mrb[0].mxu0 %v244
    %v321 = vpop.f32.mrb[0].mxu0
    %v322 = vadd.f32 %v281, %v321
    %v323 = vpop.f32.mrb[0].mxu0
    %v324 = vpop.f32.mrb[0].mxu0
    %v325 = vadd.f32 %v284, %v324
    %v326 = vpop.f32.mrb[0].mxu0
    %327 = vdwg.mxu0
    %v328 = vmax.f32 %v322, 0.0
    %v329 = vmax.f32 %v325, 0.0
    %v330 = vpack.c.bf16 %v329, %v328
    %v331 = vld [vmem:[%s3] sm:$0xf]
    %v332 = vld [vmem:[%s3 + $0x4] sm:$0xf]
    %v333 = vld [vmem:[%s3 + $0x8] sm:$0xf]
    %v334 = vld [vmem:[%s3 + $0xc] sm:$0xf]
    %v335 = vld [vmem:[%s3 + $0x10] sm:$0xf]
    %v336 = vld [vmem:[%s3 + $0x14] sm:$0xf]
    %v337 = vld [vmem:[%s3 + $0x18] sm:$0xf]
    %v338 = vld [vmem:[%s3 + $0x1c] sm:$0xf]
    %v339 = vld [vmem:[%s3 + $0x20] sm:$0xf]
    %v340 = vld [vmem:[%s3 + $0x24] sm:$0xf]
    %v341 = vld [vmem:[%s3 + $0x28] sm:$0xf]
    %v342 = vld [vmem:[%s3 + $0x2c] sm:$0xf]
    %v343 = vld [vmem:[%s3 + $0x30] sm:$0xf]
    %v344 = vld [vmem:[%s3 + $0x34] sm:$0xf]
    %v345 = vld [vmem:[%s3 + $0x38] sm:$0xf]
    %v346 = vld [vmem:[%s3 + $0x3c] sm:$0xf]
    %v347 = vld [vmem:[%s4] sm:$0x1]
    %v349 = vlaneseq
    %v350 = vshrl.u32 %v349, 7
    %v351 = vsub.s32 0, %v350
    %v352 = vrot.slane %v347, %v351
    %v370 = vunpack.c.l.b16 %v331
    %v371 = vunpack.c.l.b16 %v332
    %v372 = vunpack.c.l.b16 %v333
    %v373 = vunpack.c.l.b16 %v334
    %v374 = vunpack.c.l.b16 %v335
    %v375 = vunpack.c.l.b16 %v336
    %v376 = vunpack.c.l.b16 %v337
    %v377 = vunpack.c.l.b16 %v338
    %v378 = vunpack.c.l.b16 %v339
    %v379 = vunpack.c.l.b16 %v340
    %v380 = vunpack.c.l.b16 %v341
    %v381 = vunpack.c.l.b16 %v342
    %v382 = vunpack.c.l.b16 %v343
    %v383 = vunpack.c.l.b16 %v344
    %v384 = vunpack.c.l.b16 %v345
    %v385 = vunpack.c.l.b16 %v346
    %v386 = vpack.c.b16 %v371, %v370
    %v387 = vpack.c.b16 %v373, %v372
    %v388 = vpack.c.b16 %v375, %v374
    %v389 = vpack.c.b16 %v377, %v376
    %v390 = vpack.c.b16 %v379, %v378
    %v391 = vpack.c.b16 %v381, %v380
    %v392 = vpack.c.b16 %v383, %v382
    %v393 = vpack.c.b16 %v385, %v384
    %402 = vmatprep.subr.bf16.mxu0 0
    %403 = vmatpush1.bf16.msra.mxu0 %v386
    %404 = vmatprep.subr.bf16.mxu0 0
    %405 = vmatpush1.bf16.msra.mxu0 %v387
    %406 = vmatprep.subr.bf16.mxu0 0
    %407 = vmatpush1.bf16.msra.mxu0 %v388
    %408 = vmatprep.subr.bf16.mxu0 0
    %409 = vmatpush1.bf16.msra.mxu0 %v389
    %410 = vmatprep.subr.bf16.mxu0 0
    %411 = vmatpush1.bf16.msra.mxu0 %v390
    %412 = vmatprep.subr.bf16.mxu0 0
    %413 = vmatpush1.bf16.msra.mxu0 %v391
    %414 = vmatprep.subr.bf16.mxu0 0
    %415 = vmatpush1.bf16.msra.mxu0 %v392
    %416 = vmatprep.subr.bf16.mxu0 0
    %417 = vmatpush1.bf16.msra.mxu0 %v393
    %418 = vmatprep.subr.bf16.mxu0 0
    %419 = vmatpush1.bf16.msra.mxu0 0
    %420 = vmatprep.subr.bf16.mxu0 0
    %421 = vmatpush1.bf16.msra.mxu0 0
    %422 = vmatprep.subr.bf16.mxu0 0
    %423 = vmatpush1.bf16.msra.mxu0 0
    %424 = vmatprep.subr.bf16.mxu0 0
    %425 = vmatpush1.bf16.msra.mxu0 0
    %426 = vmatprep.subr.bf16.mxu0 0
    %427 = vmatpush1.bf16.msra.mxu0 0
    %428 = vmatprep.subr.bf16.mxu0 0
    %429 = vmatpush1.bf16.msra.mxu0 0
    %430 = vmatprep.subr.bf16.mxu0 0
    %431 = vmatpush1.bf16.msra.mxu0 0
    %432 = vmatprep.subr.bf16.mxu0 0
    %433 = vmatpush1.bf16.msra.mxu0 0
    %434 = vmatprep.mubr.bf16.mxu0 0
    %435 = vmatmul.mubr.bf16.gmra.mrb[0].mxu0 %v330
    %v436 = vpop.f32.mrb[0].mxu0
    %v437 = vadd.f32 %v352, %v436
    %v438 = vpop.f32.mrb[0].mxu0
    %v439 = vpop.f32.mrb[0].mxu0
    %v440 = vadd.f32 %v352, %v439
    %v441 = vpop.f32.mrb[0].mxu0
    %442 = vdwg.mxu0
    %v443 = vmax.f32 %v437, 0.0
    %v444 = vmax.f32 %v440, 0.0
    %v445 = vpack.c.bf16 %v444, %v443
    %v446 = vld [vmem:[%s5] sm:$0xf]
    %v447 = vld [vmem:[%s5 + $0x4] sm:$0xf]
    %v448 = vld [vmem:[%s5 + $0x8] sm:$0xf]
    %v449 = vld [vmem:[%s5 + $0xc] sm:$0xf]
    %v450 = vld [vmem:[%s5 + $0x10] sm:$0xf]
    %v451 = vld [vmem:[%s5 + $0x14] sm:$0xf]
    %v452 = vld [vmem:[%s5 + $0x18] sm:$0xf]
    %v453 = vld [vmem:[%s5 + $0x1c] sm:$0xf]
    %v454 = vld [vmem:[%s6] sm:$0x1]
    %v456 = vlaneseq
    %v457 = vshrl.u32 %v456, 7
    %v458 = vsub.s32 0, %v457
    %v459 = vrot.slane %v454, %v458
    %v469 = vunpack.c.l.b16 %v446
    %v470 = vunpack.c.l.b16 %v447
    %v471 = vunpack.c.l.b16 %v448
    %v472 = vunpack.c.l.b16 %v449
    %v473 = vunpack.c.l.b16 %v450
    %v474 = vunpack.c.l.b16 %v451
    %v475 = vunpack.c.l.b16 %v452
    %v476 = vunpack.c.l.b16 %v453
    %v477 = vpack.c.b16 %v470, %v469
    %v478 = vpack.c.b16 %v472, %v471
    %v479 = vpack.c.b16 %v474, %v473
    %v480 = vpack.c.b16 %v476, %v475
    %v486 = vsel %vm242, %v445, 0
    %488 = vmatprep.subr.bf16.mxu0 0
    %489 = vmatpush1.bf16.msra.mxu0 %v477
    %490 = vmatprep.subr.bf16.mxu0 0
    %491 = vmatpush1.bf16.msra.mxu0 %v478
    %492 = vmatprep.subr.bf16.mxu0 0
    %493 = vmatpush1.bf16.msra.mxu0 %v479
    %494 = vmatprep.subr.bf16.mxu0 0
    %495 = vmatpush1.bf16.msra.mxu0 %v480
    %496 = vmatprep.subr.bf16.mxu0 0
    %497 = vmatpush1.bf16.msra.mxu0 0
    %498 = vmatprep.subr.bf16.mxu0 0
    %499 = vmatpush1.bf16.msra.mxu0 0
    %500 = vmatprep.subr.bf16.mxu0 0
    %501 = vmatpush1.bf16.msra.mxu0 0
    %502 = vmatprep.subr.bf16.mxu0 0
    %503 = vmatpush1.bf16.msra.mxu0 0
    %504 = vmatprep.subr.bf16.mxu0 0
    %505 = vmatpush1.bf16.msra.mxu0 0
    %506 = vmatprep.subr.bf16.mxu0 0
    %507 = vmatpush1.bf16.msra.mxu0 0
    %508 = vmatprep.subr.bf16.mxu0 0
    %509 = vmatpush1.bf16.msra.mxu0 0
    %510 = vmatprep.subr.bf16.mxu0 0
    %511 = vmatpush1.bf16.msra.mxu0 0
    %512 = vmatprep.subr.bf16.mxu0 0
    %513 = vmatpush1.bf16.msra.mxu0 0
    %514 = vmatprep.subr.bf16.mxu0 0
    %515 = vmatpush1.bf16.msra.mxu0 0
    %516 = vmatprep.subr.bf16.mxu0 0
    %517 = vmatpush1.bf16.msra.mxu0 0
    %518 = vmatprep.subr.bf16.mxu0 0
    %519 = vmatpush1.bf16.msra.mxu0 0
    %520 = vmatprep.mubr.bf16.mxu0 0
    %521 = vmatmul.mubr.bf16.gmra.mrb[0].mxu0 %v486
    %v522 = vpop.f32.mrb[0].mxu0
    %v523 = vadd.f32 %v459, %v522
    %v524 = vpop.f32.mrb[0].mxu0
    %v525 = vpop.f32.mrb[0].mxu0
    %v526 = vadd.f32 %v459, %v525
    %v527 = vpop.f32.mrb[0].mxu0
    %528 = vdwg.mxu0
    %v529 = vmax.f32 %v523, 0.0
    %v530 = vmax.f32 %v526, 0.0
    %v531 = vpack.c.bf16 %v530, %v529
    %v532 = vld [vmem:[%s7] sm:$0xf]
    %v533 = vld [vmem:[%s7 + $0x4] sm:$0xf]
    %v534 = vld [vmem:[%s7 + $0x8] sm:$0xf]
    %v535 = vld [vmem:[%s7 + $0xc] sm:$0xf]
    %v536 = vld [vmem:[%s8] sm:$0x1]
    %v538 = vlaneseq
    %v539 = vshrl.u32 %v538, 7
    %v540 = vsub.s32 0, %v539
    %v541 = vrot.slane %v536, %v540
    %v547 = vunpack.c.l.b16 %v532
    %v548 = vunpack.c.l.b16 %v533
    %v549 = vunpack.c.l.b16 %v534
    %v550 = vunpack.c.l.b16 %v535
    %v551 = vpack.c.b16 %v548, %v547
    %v552 = vpack.c.b16 %v550, %v549
    %vm555 = vcmask 261120
    %v557 = vsel %vm555, %v531, 0
    %559 = vmatprep.subr.bf16.mxu0 0
    %560 = vmatpush1.bf16.msra.mxu0 %v551
    %561 = vmatprep.subr.bf16.mxu0 0
    %562 = vmatpush1.bf16.msra.mxu0 %v552
    %563 = vmatprep.subr.bf16.mxu0 0
    %564 = vmatpush1.bf16.msra.mxu0 0
    %565 = vmatprep.subr.bf16.mxu0 0
    %566 = vmatpush1.bf16.msra.mxu0 0
    %567 = vmatprep.subr.bf16.mxu0 0
    %568 = vmatpush1.bf16.msra.mxu0 0
    %569 = vmatprep.subr.bf16.mxu0 0
    %570 = vmatpush1.bf16.msra.mxu0 0
    %571 = vmatprep.subr.bf16.mxu0 0
    %572 = vmatpush1.bf16.msra.mxu0 0
    %573 = vmatprep.subr.bf16.mxu0 0
    %574 = vmatpush1.bf16.msra.mxu0 0
    %575 = vmatprep.subr.bf16.mxu0 0
    %576 = vmatpush1.bf16.msra.mxu0 0
    %577 = vmatprep.subr.bf16.mxu0 0
    %578 = vmatpush1.bf16.msra.mxu0 0
    %579 = vmatprep.subr.bf16.mxu0 0
    %580 = vmatpush1.bf16.msra.mxu0 0
    %581 = vmatprep.subr.bf16.mxu0 0
    %582 = vmatpush1.bf16.msra.mxu0 0
    %583 = vmatprep.subr.bf16.mxu0 0
    %584 = vmatpush1.bf16.msra.mxu0 0
    %585 = vmatprep.subr.bf16.mxu0 0
    %586 = vmatpush1.bf16.msra.mxu0 0
    %587 = vmatprep.subr.bf16.mxu0 0
    %588 = vmatpush1.bf16.msra.mxu0 0
    %589 = vmatprep.subr.bf16.mxu0 0
    %590 = vmatpush1.bf16.msra.mxu0 0
    %591 = vmatprep.mubr.bf16.mxu0 0
    %592 = vmatmul.mubr.bf16.gmra.mrb[0].mxu0 %v557
    %v593 = vpop.f32.mrb[0].mxu0
    %v594 = vadd.f32 %v541, %v593
    %v595 = vpop.f32.mrb[0].mxu0
    %v596 = vpop.f32.mrb[0].mxu0
    %v597 = vadd.f32 %v541, %v596
    %v598 = vpop.f32.mrb[0].mxu0
    %599 = vdwg.mxu0
    %v600 = vmax.f32 %v594, 0.0
    %v601 = vmax.f32 %v597, 0.0
    %v602 = vpack.c.bf16 %v601, %v600
    %v603 = vld [vmem:[%s9] sm:$0x1]
    %v604 = vld [vmem:[#allocation2] sm:$0x1]
    %606 = vset.pattern.permute.xlu0 0
    %607 = vperm.xlu0 %606, %v604
    %v608 = vpop.permute.xlu0 %607
    %v610 = vlaneseq
    %v611 = vshrl.u32 %v610, 7
    %v612 = vsub.s32 0, %v611
    %v613 = vrot.slane %v608, %v612
    %vm614 = vcmask 130048
    %v616 = vsel %vm614, %v603, 0
    %v619 = vsel %vm614, %v602, 0
    %621 = vmatprep.subr.bf16.mxu0 0
    %622 = vmatpush1.bf16.xpose.msra.mxu0 %v619
    %623 = vmatprep.subr.bf16.mxu0 0
    %624 = vmatpush1.bf16.xpose.msra.mxu0 0
    %625 = vmatprep.subr.bf16.mxu0 0
    %626 = vmatpush1.bf16.xpose.msra.mxu0 0
    %627 = vmatprep.subr.bf16.mxu0 0
    %628 = vmatpush1.bf16.xpose.msra.mxu0 0
    %629 = vmatprep.subr.bf16.mxu0 0
    %630 = vmatpush1.bf16.xpose.msra.mxu0 0
    %631 = vmatprep.subr.bf16.mxu0 0
    %632 = vmatpush1.bf16.xpose.msra.mxu0 0
    %633 = vmatprep.subr.bf16.mxu0 0
    %634 = vmatpush1.bf16.xpose.msra.mxu0 0
    %635 = vmatprep.subr.bf16.mxu0 0
    %636 = vmatpush1.bf16.xpose.msra.mxu0 0
    %637 = vmatprep.subr.bf16.mxu0 0
    %638 = vmatpush1.bf16.xpose.msra.mxu0 0
    %639 = vmatprep.subr.bf16.mxu0 0
    %640 = vmatpush1.bf16.xpose.msra.mxu0 0
    %641 = vmatprep.subr.bf16.mxu0 0
    %642 = vmatpush1.bf16.xpose.msra.mxu0 0
    %643 = vmatprep.subr.bf16.mxu0 0
    %644 = vmatpush1.bf16.xpose.msra.mxu0 0
    %645 = vmatprep.subr.bf16.mxu0 0
    %646 = vmatpush1.bf16.xpose.msra.mxu0 0
    %647 = vmatprep.subr.bf16.mxu0 0
    %648 = vmatpush1.bf16.xpose.msra.mxu0 0
    %649 = vmatprep.subr.bf16.mxu0 0
    %650 = vmatpush1.bf16.xpose.msra.mxu0 0
    %651 = vmatprep.subr.bf16.mxu0 0
    %652 = vmatpush1.bf16.xpose.msra.mxu0 0
    %653 = vmatprep.mubr.bf16.mxu0 0
    %654 = vmatmul.mubr.bf16.gmra.mrb[0].mxu0 %v616
    %v655 = vpop.f32.mrb[0].mxu0
    %v656 = vadd.f32 %v613, %v655
    %v657 = vpop.f32.mrb[0].mxu0
    %v658 = vpop.f32.mrb[0].mxu0
    %v659 = vpop.f32.mrb[0].mxu0
    %660 = vdwg.mxu0
    %vm661 = vcmask 122880
    %662 = vst.msk [vmem:[#allocation6] sm:$0x1] %vm661, %v656
    // Predicated region
    $region50: #{tpu_custom_call.1} parent=1 // pred_check
      _
    $region51: #{tpu_custom_call.1} parent=1 // pred_check_branch
      %664 = sbr.rel (0) target = $region53
    $region52: #{tpu_custom_call.1} parent=1 // pred_region
      %s666 = ssub.s32 16, 16
      %667 = vsyncadd [#allocation5], %s666
      %s669 = sshll.u32 [#allocation6], 4
      %s670 = int_to_ptr.vmem [resolvable:$true] %s669
      %672 = dma.vmem_to_hbm [thread:$0]  %s670, 16, %s11, [#allocation5]
    $region53: #{tpu_custom_call.1} parent=1 // pred_fallthru
      _
    // Predicated region
    $region54: #{tpu_custom_call.1} parent=1 // pred_check
      _
    $region55: #{tpu_custom_call.1} parent=1 // pred_check_branch
      %674 = sbr.rel (0) target = $region57
    $region56: #{tpu_custom_call.1} parent=1 // pred_region
      %675 = dma.done [#allocation5], 16
    $region57: #{tpu_custom_call.1} parent=1 // pred_fallthru
      _
    %676 = vsyncpa [#allocation4], 1
    %677 = vsyncpa [#allocation5], 1

</llo_original>
